<compile_context>
chip_gen: v5e
topology: v5e:2x2
jax: 0.10.0
libtpu: 0.0.40
codegen_flags: <defaults>
</compile_context>

<pallas_src>
import functools

import jax
import jax.numpy as jnp
from jax import lax
from jax.experimental import pallas as pl
from jax.experimental.pallas import tpu as pltpu

GAMMA = 1.5
ALPHA = 0.25

_LANE = 128
_SUBLANE = 8
_SMALL_BYTES = 1 << 20          # below this, pure-jnp fast path (launch-dominated)


def _round_up(a, b):
    return ((a + b - 1) // b) * b


def _device_kind():
    try:
        return jax.devices()[0].device_kind.lower()
    except Exception:
        return ""


_KIND = _device_kind()
_IS_V7 = "v7" in _KIND
# 2 TensorCores only on v7x; on single-TC chips a core split is pure overhead.
_NCORES = 2 if _IS_V7 else 1
# ~0.35us fixed cost per grid step -> stream 2 MiB (f32) blocks per input,
# 4 MiB on v7x where 3.2 TB/s makes small steps overhead-dominated.
_TM_MAX = 8192 if _IS_V7 else 4096


def _sublane_pack(dtype):
    # Rows per packed vreg: 8 for 32-bit, 16 for 16-bit, 32 for 8-bit dtypes.
    return max(_SUBLANE, 32 // jnp.dtype(dtype).itemsize)


def _elementwise_loss(x, y, gamma, alpha, approx_recip=False):
    """Per-element focal loss in f32. x = logits, y = targets (same shape)."""
    x = x.astype(jnp.float32)
    y = y.astype(jnp.float32)
    # Shared transcendental: e = exp(-|x|)
    e = jnp.exp(-jnp.abs(x))
    # BCE-with-logits (reduction='none'), numerically stable.
    bce = jnp.maximum(x, 0.0) - x * y + jnp.log1p(e)
    one_plus_e = 1.0 + e
    if approx_recip:
        inv = pl.reciprocal(one_plus_e, approx=True)   # EUP vrcp (kernel-only, v7x)
    else:
        inv = 1.0 / one_plus_e
    # sigmoid(x) reusing e:  x>=0 -> 1/(1+e),  x<0 -> e/(1+e)
    p = jnp.where(x >= 0.0, inv, e * inv)
    p_t = y * p + (1.0 - y) * (1.0 - p)
    alpha_factor = y * alpha + (1.0 - y) * (1.0 - alpha)
    t = jnp.maximum(1.0 - p_t, 0.0)
    if gamma == 1.5:
        mod = t * jnp.sqrt(t)
    elif gamma == 2.0:
        mod = t * t
    elif gamma == 1.0:
        mod = t
    else:
        mod = t ** gamma
    return bce * alpha_factor * mod


def _focal_loss_kernel(pred_ref, truth_ref, out_ref, *, gamma, alpha, tm, steps,
                       rows, edge, approx_recip):
    c = pl.program_id(0)       # core / partial-sum slot ("parallel")
    i = pl.program_id(1)       # reduction step within this core ("arbitrary")

    @pl.when(i == 0)
    def _init():
        out_ref[...] = jnp.zeros_like(out_ref)

    loss = _elementwise_loss(pred_ref[...], truth_ref[...], gamma, alpha,
                             approx_recip=approx_recip)

    def _acc(v):
        # Reduce sublane groups only (plain VPU adds); the single cross-lane
        # reduction happens once in the wrapper.
        out_ref[...] += v.reshape(tm // _SUBLANE, _SUBLANE, _LANE).sum(axis=0)

    if not edge:
        _acc(loss)
    else:
        # Only blocks extending past `rows` need masking; all other steps take
        # the unmasked hot path (the cold branch is skipped at runtime).
        row0 = (c * steps + i) * tm
        is_edge_blk = row0 + tm > rows

        @pl.when(jnp.logical_not(is_edge_blk))
        def _full():
            _acc(loss)

        @pl.when(is_edge_blk)
        def _partial():
            # Row-index mask (no flat element index -> no int32 overflow).
            ridx = lax.broadcasted_iota(jnp.int32, (tm, _LANE), 0) + row0
            _acc(jnp.where(ridx < rows, loss, 0.0))


def focal_loss(prediction, truth, gamma=GAMMA, alpha=ALPHA, reduction="mean",
               use_pallas=None, tm_max=None):
    """Focal loss over BCEWithLogits. prediction/truth: same shape (e.g. NCHW)."""
    prediction = jnp.asarray(prediction)
    truth = jnp.asarray(truth)
    assert prediction.shape == truth.shape
    n = int(prediction.size)
    if reduction not in ("mean", "sum"):
        # TODO(synk): reduction='none' would need an elementwise-output kernel.
        raise NotImplementedError("only 'mean'/'sum' reductions implemented")

    itemsize = max(prediction.dtype.itemsize, truth.dtype.itemsize)
    if use_pallas is None:
        use_pallas = n * itemsize > _SMALL_BYTES

    # Sublane packing of the narrowest input dtype (8 f32 / 16 bf16 / 32 int8).
    pack = max(_sublane_pack(prediction.dtype), _sublane_pack(truth.dtype))
    block_grain = pack * _LANE
    rows = (n // block_grain) * pack          # aligned main-region rows
    n_main = rows * _LANE

    flat_p = prediction.reshape(-1)
    flat_t = truth.reshape(-1)

    if not use_pallas or rows == 0:
        loss_sum = jnp.sum(_elementwise_loss(flat_p, flat_t, gamma, alpha))
    else:
        tmm = _TM_MAX if tm_max is None else _round_up(tm_max, pack)
        ncores = _NCORES
        tm = min(tmm, _round_up(pl.cdiv(rows, ncores), pack))
        nblocks = pl.cdiv(rows, tm)
        steps = pl.cdiv(nblocks, ncores)
        edge = (rows % tm != 0) or (ncores * steps != nblocks)

        if n_main != n:
            # Kernel runs over the aligned prefix only; the (< pack*128 element)
            # tail is folded in with plain jnp instead of jnp.pad-copying both
            # full inputs through HBM.
            # TODO(synk): a manual-DMA (pl.ANY) path could avoid even the
            # prefix-slice materialisation for ragged sizes.
            main_p = flat_p[:n_main]
            main_t = flat_t[:n_main]
        else:
            main_p, main_t = flat_p, flat_t

        pred2 = main_p.reshape(rows, _LANE)    # zero-copy reshape (contiguous)
        truth2 = main_t.reshape(rows, _LANE)

        last_block = nblocks - 1

        def in_index(c, i):
            # Clamp so a spurious trailing block (odd block count split across
            # 2 cores) stays in bounds; its contribution is masked to zero.
            return (jnp.minimum(c * steps + i, last_block), 0)

        kernel = functools.partial(
            _focal_loss_kernel, gamma=gamma, alpha=alpha, tm=tm, steps=steps,
            rows=rows, edge=edge, approx_recip=_IS_V7)

        partials = pl.pallas_call(
            kernel,
            out_shape=jax.ShapeDtypeStruct((ncores * _SUBLANE, _LANE), jnp.float32),
            grid=(ncores, steps),
            in_specs=[
                pl.BlockSpec((tm, _LANE), in_index),
                pl.BlockSpec((tm, _LANE), in_index),
            ],
            out_specs=pl.BlockSpec((_SUBLANE, _LANE), lambda c, i: (c, 0)),
            compiler_params=pltpu.CompilerParams(
                dimension_semantics=("parallel", "arbitrary")),
        )(pred2, truth2)

        loss_sum = jnp.sum(partials)
        if n_main != n:
            loss_sum = loss_sum + jnp.sum(
                _elementwise_loss(flat_p[n_main:], flat_t[n_main:], gamma, alpha))

    if reduction == "mean":
        return loss_sum / jnp.float32(n)
    return loss_sum


def _reference(prediction, truth, gamma=GAMMA, alpha=ALPHA):
    x = jnp.asarray(prediction).astype(jnp.float32)
    y = jnp.asarray(truth).astype(jnp.float32)
    bce = jnp.maximum(x, 0.0) - x * y + jnp.log1p(jnp.exp(-jnp.abs(x)))
    p = jax.nn.sigmoid(x)
    p_t = y * p + (1.0 - y) * (1.0 - p)
    af = y * alpha + (1.0 - y) * (1.0 - alpha)
    return jnp.mean(bce * af * (1.0 - p_t) ** gamma)


if __name__ == "__main__":
    key = jax.random.PRNGKey(0)
    ks = jax.random.split(key, 8)

    def _check(out, ref, name):
        assert jnp.allclose(out, ref, rtol=2e-3, atol=1e-6), (name, out, ref)

    # Case 1: NCHW, lane-aligned size; forced through the Pallas kernel.
    x1 = jax.random.normal(ks[0], (2, 4, 16, 16), dtype=jnp.float32)
    y1 = (jax.random.uniform(ks[1], (2, 4, 16, 16)) > 0.5).astype(jnp.float32)
    out1 = jax.block_until_ready(focal_loss(x1, y1, use_pallas=True))
    _check(out1, _reference(x1, y1), "aligned")

    # Case 2: ragged size (jnp tail fold-in; no full-input pad copy).
    x2 = jax.random.normal(ks[2], (1, 3, 37, 41), dtype=jnp.float32)
    y2 = (jax.random.uniform(ks[3], (1, 3, 37, 41)) > 0.5).astype(jnp.float32)
    out2 = jax.block_until_ready(focal_loss(x2, y2, use_pallas=True))
    _check(out2, _reference(x2, y2), "ragged")

    # Case 3: multi-step reduction + partial last block (in-kernel gated mask).
    x3 = jax.random.normal(ks[4], (2, 4, 130, 160), dtype=jnp.float32)
    y3 = (jax.random.uniform(ks[5], (2, 4, 130, 160)) > 0.5).astype(jnp.float32)
    out3 = jax.block_until_ready(focal_loss(x3, y3, use_pallas=True, tm_max=256))
    _check(out3, _reference(x3, y3), "multistep_edge")

    # Case 4: bf16 logits (16-row sublane packing), 'sum' reduction.
    x4 = jax.random.normal(ks[6], (2, 4, 32, 32), dtype=jnp.bfloat16)
    y4 = (jax.random.uniform(ks[7], (2, 4, 32, 32)) > 0.5).astype(jnp.float32)
    out4 = jax.block_until_ready(focal_loss(x4, y4, use_pallas=True, reduction="sum"))
    _check(out4, _reference(x4, y4) * x4.size, "bf16_sum")

    # Case 5: small-input fast path (auto dispatch -> pure jnp).
    out5 = jax.block_until_ready(focal_loss(x1, y1))
    _check(out5, _reference(x1, y1), "fastpath")

    print("KERNEL_OK")
</pallas_src>

<mosaic_0001>
module attributes {stable_mosaic.version = 11 : i64} {
  func.func @_focal_loss_kernel(%arg0: i32, %arg1: i32, %arg2: memref<16x128xf32, #tpu.memory_space<vmem>>, %arg3: memref<16x128xf32, #tpu.memory_space<vmem>>, %arg4: memref<8x128xf32, #tpu.memory_space<vmem>>) attributes {dimension_semantics = [#tpu.dimension_semantics<parallel>, #tpu.dimension_semantics<arbitrary>], iteration_bounds = array<i64: 1, 1>, scalar_prefetch = 0 : i64, scratch_operands = 0 : i64, tpu.core_type = #tpu.core_type<tc>, window_params = [{transform_indices = @transform_0, window_bounds = array<i64: 16, 128>}, {transform_indices = @transform_1, window_bounds = array<i64: 16, 128>}, {transform_indices = @transform_2, window_bounds = array<i64: 8, 128>}]} {
    %c0_i32 = arith.constant 0 : i32
    %0 = arith.cmpi eq, %arg1, %c0_i32 : i32
    %1 = arith.extui %0 : i1 to i32
    %c0_i32_0 = arith.constant 0 : i32
    %2 = arith.cmpi ne, %1, %c0_i32_0 : i32
    scf.if %2 {
      %cst_20 = arith.constant 0.000000e+00 : f32
      %50 = vector.broadcast %cst_20 : f32 to vector<8x128xf32>
      %c0_21 = arith.constant 0 : index
      %c0_22 = arith.constant 0 : index
      %51 = vector.load %arg4[%c0_21, %c0_22] : memref<8x128xf32, #tpu.memory_space<vmem>>, vector<8x128xf32>
      tpu.vector_store %arg4[%c0_21, %c0_22], %50 {strides = array<i32>} : memref<8x128xf32, #tpu.memory_space<vmem>>, vector<8x128xf32>,
    } else {
    }
    %c0 = arith.constant 0 : index
    %c0_1 = arith.constant 0 : index
    %3 = vector.load %arg2[%c0, %c0_1] : memref<16x128xf32, #tpu.memory_space<vmem>>, vector<16x128xf32>
    %c0_2 = arith.constant 0 : index
    %c0_3 = arith.constant 0 : index
    %4 = vector.load %arg3[%c0_2, %c0_3] : memref<16x128xf32, #tpu.memory_space<vmem>>, vector<16x128xf32>
    %5 = math.absf %3 : vector<16x128xf32>
    %cst = arith.constant 0.000000e+00 : f32
    %6 = vector.broadcast %cst : f32 to vector<16x128xf32>
    %7 = arith.subf %6, %5 : vector<16x128xf32>
    %8 = math.exp %7 : vector<16x128xf32>
    %cst_4 = arith.constant 0.000000e+00 : f32
    %9 = vector.broadcast %cst_4 : f32 to vector<16x128xf32>
    %10 = arith.maximumf %3, %9 : vector<16x128xf32>
    %11 = arith.mulf %3, %4 : vector<16x128xf32>
    %12 = arith.subf %10, %11 : vector<16x128xf32>
    %13 = math.log1p %8 : vector<16x128xf32>
    %14 = arith.addf %12, %13 : vector<16x128xf32>
    %cst_5 = arith.constant 1.000000e+00 : f32
    %15 = vector.broadcast %cst_5 : f32 to vector<16x128xf32>
    %16 = arith.addf %15, %8 : vector<16x128xf32>
    %cst_6 = arith.constant 1.000000e+00 : f32
    %17 = vector.broadcast %cst_6 : f32 to vector<16x128xf32>
    %18 = arith.divf %17, %16 : vector<16x128xf32>
    %cst_7 = arith.constant 0.000000e+00 : f32
    %19 = vector.broadcast %cst_7 : f32 to vector<16x128xf32>
    %20 = arith.cmpf oge, %3, %19 : vector<16x128xf32>
    %21 = arith.mulf %8, %18 : vector<16x128xf32>
    %22 = arith.select %20, %18, %21 : vector<16x128xi1>, vector<16x128xf32>
    %23 = arith.mulf %4, %22 : vector<16x128xf32>
    %cst_8 = arith.constant 1.000000e+00 : f32
    %24 = vector.broadcast %cst_8 : f32 to vector<16x128xf32>
    %25 = arith.subf %24, %4 : vector<16x128xf32>
    %cst_9 = arith.constant 1.000000e+00 : f32
    %26 = vector.broadcast %cst_9 : f32 to vector<16x128xf32>
    %27 = arith.subf %26, %22 : vector<16x128xf32>
    %28 = arith.mulf %25, %27 : vector<16x128xf32>
    %29 = arith.addf %23, %28 : vector<16x128xf32>
    %cst_10 = arith.constant 2.500000e-01 : f32
    %30 = vector.broadcast %cst_10 : f32 to vector<16x128xf32>
    %31 = arith.mulf %4, %30 : vector<16x128xf32>
    %cst_11 = arith.constant 1.000000e+00 : f32
    %32 = vector.broadcast %cst_11 : f32 to vector<16x128xf32>
    %33 = arith.subf %32, %4 : vector<16x128xf32>
    %cst_12 = arith.constant 7.500000e-01 : f32
    %34 = vector.broadcast %cst_12 : f32 to vector<16x128xf32>
    %35 = arith.mulf %33, %34 : vector<16x128xf32>
    %36 = arith.addf %31, %35 : vector<16x128xf32>
    %cst_13 = arith.constant 1.000000e+00 : f32
    %37 = vector.broadcast %cst_13 : f32 to vector<16x128xf32>
    %38 = arith.subf %37, %29 : vector<16x128xf32>
    %cst_14 = arith.constant 0.000000e+00 : f32
    %39 = vector.broadcast %cst_14 : f32 to vector<16x128xf32>
    %40 = arith.maximumf %38, %39 : vector<16x128xf32>
    %41 = math.sqrt %40 : vector<16x128xf32>
    %42 = arith.mulf %40, %41 : vector<16x128xf32>
    %43 = arith.mulf %14, %36 : vector<16x128xf32>
    %44 = arith.mulf %43, %42 : vector<16x128xf32>
    %c0_15 = arith.constant 0 : index
    %c0_16 = arith.constant 0 : index
    %45 = vector.load %arg4[%c0_15, %c0_16] : memref<8x128xf32, #tpu.memory_space<vmem>>, vector<8x128xf32>
    %46 = vector.shape_cast %44 : vector<16x128xf32> to vector<2x8x128xf32>
    %cst_17 = arith.constant dense<0.000000e+00> : vector<8x128xf32>
    %47 = vector.multi_reduction <add>, %46, %cst_17 [0] : vector<2x8x128xf32> to vector<8x128xf32>
    %48 = arith.addf %45, %47 : vector<8x128xf32>
    %c0_18 = arith.constant 0 : index
    %c0_19 = arith.constant 0 : index
    %49 = vector.load %arg4[%c0_18, %c0_19] : memref<8x128xf32, #tpu.memory_space<vmem>>, vector<8x128xf32>
    tpu.vector_store %arg4[%c0_18, %c0_19], %48 {strides = array<i32>} : memref<8x128xf32, #tpu.memory_space<vmem>>, vector<8x128xf32>,
    return
  }
  func.func @transform_0(%arg0: i32, %arg1: i32) -> (i32, i32) {
    %c1_i32 = arith.constant 1 : i32
    %0 = arith.muli %arg0, %c1_i32 : i32
    %1 = arith.addi %0, %arg1 : i32
    %c0_i32 = arith.constant 0 : i32
    %2 = arith.minsi %1, %c0_i32 : i32
    %c0_i32_0 = arith.constant 0 : i32
    %c0_i32_1 = arith.constant 0 : i32
    return %2, %c0_i32_0 : i32, i32
  }
  func.func @transform_1(%arg0: i32, %arg1: i32) -> (i32, i32) {
    %c1_i32 = arith.constant 1 : i32
    %0 = arith.muli %arg0, %c1_i32 : i32
    %1 = arith.addi %0, %arg1 : i32
    %c0_i32 = arith.constant 0 : i32
    %2 = arith.minsi %1, %c0_i32 : i32
    %c0_i32_0 = arith.constant 0 : i32
    %c0_i32_1 = arith.constant 0 : i32
    return %2, %c0_i32_0 : i32, i32
  }
  func.func @transform_2(%arg0: i32, %arg1: i32) -> (i32, i32) {
    %c0_i32 = arith.constant 0 : i32
    %c0_i32_0 = arith.constant 0 : i32
    return %arg0, %c0_i32 : i32, i32
  }
}

</mosaic_0001>

<llo_original>
// kernel: tpu_custom_call.1
$region0: #{tpu_custom_call.1}
  #allocation0 [shape = 'u32[]', space=smem, size = 0x4, offset = 0x4, fixed_abs, tag = 'smem constant byte address 0x4 - core index']
  #allocation1 [shape = 'u32[72,128]{1,0:T(1,128)}', space=vmem, size = 0x9000, scoped, tag = 'internal scratch']
  %s0 = inlined_call_operand.hbm [shape: f32[16,128], index: 0, kind: input, shape index: {}]
  %s1 = inlined_call_operand.hbm [shape: f32[16,128], index: 1, kind: input, shape index: {}]
  %s2 = inlined_call_operand.hbm [shape: f32[8,128], index: 2, kind: output, shape index: {}]
  %s3 = sld [smem:[#allocation0]]
  $region30: #{tpu_custom_call.1} parent=0
    _
  %s5 = ssub.s32 1, %s3
  %s6 = scalar_select 0, %s5, %s3
  $region1: #{tpu_custom_call.1} parent=0
    #allocation2 [shape = 'u8[8192]{0}', space=vmem, size = 0x2000, scoped, tag = 'input window, operand 0, single buffered']
    #allocation3 [shape = 's32[1]{0}', space=sflag, size = 0x4, scoped, tag = 'scoped memory for tpu_custom_call.1']
    #allocation4 [shape = 's32[1]{0}', space=sflag, size = 0x4, scoped, tag = 'scoped memory for tpu_custom_call.1']
    #allocation5 [shape = 'u8[8192]{0}', space=vmem, size = 0x2000, scoped, tag = 'input window, operand 1, single buffered']
    #allocation6 [shape = 's32[1]{0}', space=sflag, size = 0x4, scoped, tag = 'scoped memory for tpu_custom_call.1']
    #allocation7 [shape = 'u8[4096]{0}', space=vmem, size = 0x1000, scoped, tag = 'output window, operand 0, single buffered']
    %7 = vsyncpa [#allocation3], 0
    %8 = vsyncpa [#allocation6], 0
    %9 = vsyncpa [#allocation4], 0
    // Predicated region
    $region2: #{tpu_custom_call.1} parent=1 // pred_check
      _
    $region3: #{tpu_custom_call.1} parent=1 // pred_check_branch
      %11 = sbr.rel (0) target = $region5
    $region4: #{tpu_custom_call.1} parent=1 // pred_region
      %s12 = sadd.s32 0, 0
      %p13 = scmp.lt.s32.totalorder %s12, 0
      %s14 = scalar_select %p13, %s12, 0
      %s15 = smul.u32 2, %s14
      %17 = vsyncadd [#allocation3], 0
      %s18 = smul.addr %s15, 8
      %s19 = scalar_lea.hbm %s0, %s18
      %s20 = sshll.u32 %s19, 4
      %s21 = int_to_ptr.hbm [resolvable:$true] %s20
      %s22 = sshll.u32 [#allocation2], 4
      %s23 = int_to_ptr.vmem [resolvable:$true] %s22
      %28 = dma.hbm_to_vmem [thread:$0]  %s21, 256, %s23, [#allocation3], 128, 128, 8
    $region5: #{tpu_custom_call.1} parent=1 // pred_fallthru
      _
    // Predicated region
    $region6: #{tpu_custom_call.1} parent=1 // pred_check
      _
    $region7: #{tpu_custom_call.1} parent=1 // pred_check_branch
      %30 = sbr.rel (0) target = $region9
    $region8: #{tpu_custom_call.1} parent=1 // pred_region
      %s31 = sadd.s32 0, 0
      %p32 = scmp.lt.s32.totalorder %s31, 0
      %s33 = scalar_select %p32, %s31, 0
      %s34 = smul.u32 2, %s33
      %36 = vsyncadd [#allocation6], 0
      %s37 = smul.addr %s34, 8
      %s38 = scalar_lea.hbm %s1, %s37
      %s39 = sshll.u32 %s38, 4
      %s40 = int_to_ptr.hbm [resolvable:$true] %s39
      %s41 = sshll.u32 [#allocation5], 4
      %s42 = int_to_ptr.vmem [resolvable:$true] %s41
      %47 = dma.hbm_to_vmem [thread:$0]  %s40, 256, %s42, [#allocation6], 128, 128, 8
    $region9: #{tpu_custom_call.1} parent=1 // pred_fallthru
      _
    // Predicated region
    $region10: #{tpu_custom_call.1} parent=1 // pred_check
      _
    $region11: #{tpu_custom_call.1} parent=1 // pred_check_branch
      %49 = sbr.rel (0) target = $region13
    $region12: #{tpu_custom_call.1} parent=1 // pred_region
      %51 = dma.done [#allocation3], 256
    $region13: #{tpu_custom_call.1} parent=1 // pred_fallthru
      _
    // Predicated region
    $region14: #{tpu_custom_call.1} parent=1 // pred_check
      _
    $region15: #{tpu_custom_call.1} parent=1 // pred_check_branch
      %53 = sbr.rel (0) target = $region17
    $region16: #{tpu_custom_call.1} parent=1 // pred_region
      %55 = dma.done [#allocation6], 256
    $region17: #{tpu_custom_call.1} parent=1 // pred_fallthru
      _
    %s56 = sadd.s32 0, 0
    %p57 = scmp.lt.s32.totalorder %s56, 0
    %s58 = scalar_select %p57, %s56, 0
    %s59 = smul.u32 2, %s58
    %s60 = sadd.s32 0, 0
    %p61 = scmp.lt.s32.totalorder %s60, 0
    %s62 = scalar_select %p61, %s60, 0
    %s63 = smul.u32 2, %s62
    %p64 = scmp.eq.s32.totalorder 0, 0
    // Predicated region
    $region18: #{tpu_custom_call.1} parent=1 // pred_check
      %p65 = pneg %p64
    $region19: #{tpu_custom_call.1} parent=1 // pred_check_branch
      %67 = sbr.rel (%p65) target = $region21
    $region20: #{tpu_custom_call.1} parent=1 // pred_region
      %68 = vst [vmem:[#allocation7] sm:$0xff] 0.0
    $region21: #{tpu_custom_call.1} parent=1 // pred_fallthru
      _
    %v69 = vld [vmem:[#allocation2] sm:$0xff]
    %v70 = vld [vmem:[#allocation2 + $0x8] sm:$0xff]
    %v71 = vld [vmem:[#allocation5] sm:$0xff]
    %v72 = vld [vmem:[#allocation5 + $0x8] sm:$0xff]
    %v73 = vand.u32 2147483647, %v69
    %v74 = vand.u32 2147483647, %v70
    %v75 = vsub.f32 0.0, %v73
    %v76 = vsub.f32 0.0, %v74
    %v77 = vmul.f32 %v75, 1.442695
    %v78 = vpow.pop %v77
    %v79 = vmul.f32 %v76, 1.442695
    %v80 = vpow.pop %v79
    %v81 = vmax.f32 %v69, 0.0
    %v82 = vmax.f32 %v70, 0.0
    %v83 = vmul.f32 %v69, %v71
    %v84 = vmul.f32 %v70, %v72
    %v85 = vsub.f32 %v81, %v83
    %v86 = vsub.f32 %v82, %v84
    %v87 = vadd.f32 %v78, 1.0
    %v88 = vlog2.pop %v87
    %v89 = vmul.f32 %v88, 0.6931472
    %v90 = vmul.f32 -0.5, %v78
    %v91 = vadd.f32 %v90, 1.0
    %v92 = vmul.f32 %v91, %v78
    %v93 = vand.u32 2147483647, %v78
    %vm94 = vcmp.lt.f32.partialorder %v93, 0.0004427343
    %v95 = vsel %vm94, %v92, %v89
    %v96 = vadd.f32 %v80, 1.0
    %v97 = vlog2.pop %v96
    %v98 = vmul.f32 %v97, 0.6931472
    %v99 = vmul.f32 -0.5, %v80
    %v100 = vadd.f32 %v99, 1.0
    %v101 = vmul.f32 %v100, %v80
    %v102 = vand.u32 2147483647, %v80
    %vm103 = vcmp.lt.f32.partialorder %v102, 0.0004427343
    %v104 = vsel %vm103, %v101, %v98
    %v105 = vadd.f32 %v85, %v95
    %v106 = vadd.f32 %v86, %v104
    %v107 = vadd.f32 %v78, 1.0
    %v108 = vadd.f32 %v80, 1.0
    %v109 = vrcp.pop %v107
    %v110 = vmul.f32 %v107, %v109
    %v111 = vsub.f32 1.0, %v110
    %v112 = vmul.f32 %v109, %v111
    %v113 = vadd.f32 %v109, %v112
    %vm114 = vweird.f32 %v107
    %vm115 = vweird.f32 %v109
    %vm116 = vmor %vm114, %vm115
    %v117 = vsel %vm116, %v109, %v113
    %v118 = vand.u32 2147483647, %v107
    %vm119 = vcmp.eq.f32.partialorder %v118, 8.507059e+37
    %v120 = vand.u32 %v107, 2147483648
    %v121 = vor.u32 1.1754944e-38, %v120
    %v122 = vsel %vm119, %v121, %v117
    %v123 = vmul.f32 1.0, %v122
    %v124 = vrcp.pop %v108
    %v125 = vmul.f32 %v108, %v124
    %v126 = vsub.f32 1.0, %v125
    %v127 = vmul.f32 %v124, %v126
    %v128 = vadd.f32 %v124, %v127
    %vm129 = vweird.f32 %v108
    %vm130 = vweird.f32 %v124
    %vm131 = vmor %vm129, %vm130
    %v132 = vsel %vm131, %v124, %v128
    %v133 = vand.u32 2147483647, %v108
    %vm134 = vcmp.eq.f32.partialorder %v133, 8.507059e+37
    %v135 = vand.u32 %v108, 2147483648
    %v136 = vor.u32 1.1754944e-38, %v135
    %v137 = vsel %vm134, %v136, %v132
    %v138 = vmul.f32 1.0, %v137
    %vm139 = vcmp.ge.f32.partialorder %v69, 0.0
    %vm140 = vcmp.ge.f32.partialorder %v70, 0.0
    %v141 = vmul.f32 %v78, %v123
    %v142 = vmul.f32 %v80, %v138
    %v143 = vsel %vm139, %v123, %v141
    %v144 = vsel %vm140, %v138, %v142
    %v145 = vmul.f32 %v71, %v143
    %v146 = vmul.f32 %v72, %v144
    %v147 = vsub.f32 1.0, %v71
    %v148 = vsub.f32 1.0, %v72
    %v149 = vsub.f32 1.0, %v143
    %v150 = vsub.f32 1.0, %v144
    %v151 = vmul.f32 %v147, %v149
    %v152 = vmul.f32 %v148, %v150
    %v153 = vadd.f32 %v145, %v151
    %v154 = vadd.f32 %v146, %v152
    %v155 = vmul.f32 %v71, 0.25
    %v156 = vmul.f32 %v72, 0.25
    %v157 = vmul.f32 %v147, 0.75
    %v158 = vmul.f32 %v148, 0.75
    %v159 = vadd.f32 %v155, %v157
    %v160 = vadd.f32 %v156, %v158
    %v161 = vsub.f32 1.0, %v153
    %v162 = vsub.f32 1.0, %v154
    %v163 = vmax.f32 %v161, 0.0
    %v164 = vmax.f32 %v162, 0.0
    %v165 = vrsqrt.pop %v163
    %v166 = vmul.f32 %v165, %v163
    %v167 = vmul.f32 %v166, %v165
    %v168 = vmul.f32 0.5, %v167
    %v169 = vsub.f32 1.5, %v168
    %v170 = vmul.f32 %v165, %v169
    %v171 = vmul.f32 %v163, %v170
    %vm172 = vcmp.eq.f32.partialorder %v163, inf
    %v173 = vsel %vm172, %v163, %v171
    %vm174 = vcmp.eq.f32.partialorder %v163, 0.0
    %v175 = vand.u32 %v163, 2147483648
    %v176 = vsel %vm174, %v175, %v173
    %v177 = vrsqrt.pop %v164
    %v178 = vmul.f32 %v177, %v164
    %v179 = vmul.f32 %v178, %v177
    %v180 = vmul.f32 0.5, %v179
    %v181 = vsub.f32 1.5, %v180
    %v182 = vmul.f32 %v177, %v181
    %v183 = vmul.f32 %v164, %v182
    %vm184 = vcmp.eq.f32.partialorder %v164, inf
    %v185 = vsel %vm184, %v164, %v183
    %vm186 = vcmp.eq.f32.partialorder %v164, 0.0
    %v187 = vand.u32 %v164, 2147483648
    %v188 = vsel %vm186, %v187, %v185
    %v189 = vmul.f32 %v163, %v176
    %v190 = vmul.f32 %v164, %v188
    %v191 = vmul.f32 %v105, %v159
    %v192 = vmul.f32 %v106, %v160
    %v193 = vmul.f32 %v191, %v189
    %v194 = vmul.f32 %v192, %v190
    %v195 = vld [vmem:[#allocation7] sm:$0xff]
    %v196 = vadd.f32 %v193, %v194
    %v197 = vadd.f32 %v195, %v196
    %198 = vst [vmem:[#allocation7] sm:$0xff] %v197
    // Predicated region
    $region22: #{tpu_custom_call.1} parent=1 // pred_check
      _
    $region23: #{tpu_custom_call.1} parent=1 // pred_check_branch
      %200 = sbr.rel (0) target = $region25
    $region24: #{tpu_custom_call.1} parent=1 // pred_region
      %202 = vsyncadd [#allocation4], 0
      %s204 = sshll.u32 [#allocation7], 4
      %s205 = int_to_ptr.vmem [resolvable:$true] %s204
      %s206 = sshll.u32 %s2, 4
      %s207 = int_to_ptr.hbm [resolvable:$true] %s206
      %209 = dma.vmem_to_hbm [thread:$0]  %s205, 128, %s207, [#allocation4]
    $region25: #{tpu_custom_call.1} parent=1 // pred_fallthru
      _
    // Predicated region
    $region26: #{tpu_custom_call.1} parent=1 // pred_check
      _
    $region27: #{tpu_custom_call.1} parent=1 // pred_check_branch
      %211 = sbr.rel (0) target = $region29
    $region28: #{tpu_custom_call.1} parent=1 // pred_region
      %213 = dma.done [#allocation4], 128
    $region29: #{tpu_custom_call.1} parent=1 // pred_fallthru
      _
    %214 = vsyncpa [#allocation3], 1
    %215 = vsyncpa [#allocation6], 1
    %216 = vsyncpa [#allocation4], 1

</llo_original>
